<compile_context>
chip_gen: v6e
topology: v6e:2x2x1
jax: 0.10.0
libtpu: 0.0.40
codegen_flags: <defaults>
</compile_context>

<pallas_src>
import numpy as np
import jax
import jax.numpy as jnp
from jax.experimental import pallas as pl
from jax.experimental.pallas import tpu as pltpu


def _round_up(x, m):
    return (x + m - 1) // m * m


# ----------------------------------------------------------------------------
# Fused kernel: masked-mean "encoder" pooler + all AdvNN heads in one pass.
# ----------------------------------------------------------------------------
def attacker_kernel(emb_ref, mask_ref, wp_ref, bp_ref,
                    w1_ref, b1_ref, w2_ref, b2_ref, out_ref):
    emb = emb_ref[...]                          # (Bp, S, H)  f32
    m = mask_ref[...]                           # (Bp, S)     f32 {0,1}

    # Masked mean over the sequence (exact f32 on the VPU; MXU-contraction
    # form is the production-shape path, see TODO above).
    summed = jnp.sum(emb * m[:, :, None], axis=1)              # (Bp, H)
    denom = jnp.maximum(jnp.sum(m, axis=1, keepdims=True), 1.0)
    pooled_tok = summed / denom                                # (Bp, H)

    # BERT pooler: dense + tanh (tanh goes to the EUP).
    pooled = jnp.tanh(
        jnp.dot(pooled_tok, wp_ref[...],
                preferred_element_type=jnp.float32) + bp_ref[...])   # (Bp, H)

    # All attacker heads at once: layer-1 weights concatenated along columns.
    h = jnp.tanh(
        jnp.dot(pooled, w1_ref[...],
                preferred_element_type=jnp.float32) + b1_ref[...])   # (Bp, heads*H)

    # Layer 2 as a block-diagonal matmul (no cross-head contamination);
    # output is lane-padded to a full 128-lane slab -> unmasked stores.
    out_ref[...] = (
        jnp.dot(h, w2_ref[...],
                preferred_element_type=jnp.float32) + b2_ref[...])   # (Bp, OUT_PAD)


# ----------------------------------------------------------------------------
# Attacker forward (glue in plain JAX, whole hot path in one Pallas kernel)
# ----------------------------------------------------------------------------
def attacker_forward(params, sent_id, mask):
    B, S = sent_id.shape
    H = params["emb_table"].shape[1]
    heads, _, O = params["w2"].shape

    Bp = _round_up(B, 8)                   # sublane-aligned batch
    OUT_PAD = _round_up(heads * O, 128)    # lane-dense output slab

    # Pad batch BEFORE the gather so the (Bp, S, H) activation is born padded
    # (padding rows use token 0 / mask 0 and are sliced off at the end).
    sent_pad = jnp.pad(sent_id, ((0, Bp - B), (0, 0)))
    mask_pad = jnp.pad(mask, ((0, Bp - B), (0, 0)))

    # Embedding lookup (gather) — glue.
    emb = jnp.take(params["emb_table"], sent_pad, axis=0)      # (Bp, S, H)
    mask_f = mask_pad.astype(jnp.float32)

    # Fuse head weights once:
    #   W1cat[:, i*H:(i+1)*H]               = W1[i]   -> one (H, heads*H) matmul
    #   W2bd [i*H:(i+1)*H, i*O:(i+1)*O]     = W2[i]   -> block-diag, lane-padded
    w1cat = jnp.transpose(params["w1"], (1, 0, 2)).reshape(H, heads * H)
    b1cat = params["b1"].reshape(1, heads * H)
    w2bd = jnp.zeros((heads * H, OUT_PAD), jnp.float32)
    b2pad = jnp.zeros((1, OUT_PAD), jnp.float32)
    for i in range(heads):
        w2bd = w2bd.at[i * H:(i + 1) * H, i * O:(i + 1) * O].set(params["w2"][i])
        b2pad = b2pad.at[:, i * O:(i + 1) * O].set(params["b2"][i][None, :])

    out = pl.pallas_call(
        attacker_kernel,
        out_shape=jax.ShapeDtypeStruct((Bp, OUT_PAD), jnp.float32),
        in_specs=[
            pl.BlockSpec((Bp, S, H), lambda: (0, 0, 0)),         # embeddings
            pl.BlockSpec((Bp, S), lambda: (0, 0)),               # mask
            pl.BlockSpec((H, H), lambda: (0, 0)),                # pooler W
            pl.BlockSpec((1, H), lambda: (0, 0)),                # pooler b
            pl.BlockSpec((H, heads * H), lambda: (0, 0)),        # fused W1
            pl.BlockSpec((1, heads * H), lambda: (0, 0)),        # fused b1
            pl.BlockSpec((heads * H, OUT_PAD), lambda: (0, 0)),  # block-diag W2
            pl.BlockSpec((1, OUT_PAD), lambda: (0, 0)),          # padded b2
        ],
        out_specs=pl.BlockSpec((Bp, OUT_PAD), lambda: (0, 0)),
        compiler_params=pltpu.CompilerParams(
            vmem_limit_bytes=32 * 1024 * 1024),
    )(emb, mask_f, params["wp"], params["bp"], w1cat, b1cat, w2bd, b2pad)

    # Match PyTorch: list of per-head (B, O) tensors.
    return [out[:B, i * O:(i + 1) * O] for i in range(heads)]


# ----------------------------------------------------------------------------
# Pure-JAX reference (faithful to the PyTorch forward, eval mode)
# ----------------------------------------------------------------------------
def attacker_reference(params, sent_id, mask):
    emb = jnp.take(params["emb_table"], sent_id, axis=0)
    m = mask.astype(jnp.float32)
    summed = jnp.sum(emb * m[:, :, None], axis=1)
    denom = jnp.maximum(jnp.sum(m, axis=1, keepdims=True), 1.0)
    pooled = jnp.tanh(summed / denom @ params["wp"] + params["bp"])
    res = []
    for i in range(params["w1"].shape[0]):
        h = jnp.tanh(pooled @ params["w1"][i] + params["b1"][i:i + 1])
        res.append(h @ params["w2"][i] + params["b2"][i:i + 1])
    return res


if __name__ == "__main__":
    # Small shapes consistent with the module's forward
    B, S, H = 2, 8, 32          # batch, seq len, hidden (embedding_dim)
    VOCAB = 64
    HEADS = 2                   # attacker_heads
    OUT = 2                     # prot_out_size (e.g. gender classes)

    key = jax.random.PRNGKey(0)
    ks = jax.random.split(key, 8)
    params = {
        "emb_table": 0.02 * jax.random.normal(ks[0], (VOCAB, H), jnp.float32),
        "wp": 0.05 * jax.random.normal(ks[1], (H, H), jnp.float32),
        "bp": 0.05 * jax.random.normal(ks[2], (1, H), jnp.float32),
        "w1": 0.05 * jax.random.normal(ks[3], (HEADS, H, H), jnp.float32),
        "b1": 0.05 * jax.random.normal(ks[4], (HEADS, H), jnp.float32),
        "w2": 0.05 * jax.random.normal(ks[5], (HEADS, H, OUT), jnp.float32),
        "b2": 0.05 * jax.random.normal(ks[6], (HEADS, OUT), jnp.float32),
    }

    sent_id = jax.random.randint(ks[7], (B, S), 0, VOCAB, jnp.int32)
    lengths = jnp.array([S, S - 3], dtype=jnp.int32)
    mask = (jnp.arange(S)[None, :] < lengths[:, None]).astype(jnp.int32)

    outs = attacker_forward(params, sent_id, mask)
    outs = [jax.block_until_ready(o) for o in outs]

    refs = attacker_reference(params, sent_id, mask)
    for o, r in zip(outs, refs):
        np.testing.assert_allclose(np.asarray(o), np.asarray(r),
                                   rtol=1e-5, atol=1e-5)

    print("KERNEL_OK")
</pallas_src>

<mosaic_0001>
module attributes {stable_mosaic.version = 11 : i64} {
  func.func @attacker_kernel(%arg0: memref<8x8x32xf32, #tpu.memory_space<vmem>>, %arg1: memref<8x8xf32, #tpu.memory_space<vmem>>, %arg2: memref<32x32xf32, #tpu.memory_space<vmem>>, %arg3: memref<1x32xf32, #tpu.memory_space<vmem>>, %arg4: memref<32x64xf32, #tpu.memory_space<vmem>>, %arg5: memref<1x64xf32, #tpu.memory_space<vmem>>, %arg6: memref<64x128xf32, #tpu.memory_space<vmem>>, %arg7: memref<1x128xf32, #tpu.memory_space<vmem>>, %arg8: memref<8x128xf32, #tpu.memory_space<vmem>>) attributes {dimension_semantics = [], scalar_prefetch = 0 : i64, scratch_operands = 0 : i64, tpu.core_type = #tpu.core_type<tc>} {
    %c0 = arith.constant 0 : index
    %c0_0 = arith.constant 0 : index
    %c0_1 = arith.constant 0 : index
    %0 = vector.load %arg0[%c0, %c0_0, %c0_1] : memref<8x8x32xf32, #tpu.memory_space<vmem>>, vector<8x8x32xf32>
    %c0_2 = arith.constant 0 : index
    %c0_3 = arith.constant 0 : index
    %1 = vector.load %arg1[%c0_2, %c0_3] : memref<8x8xf32, #tpu.memory_space<vmem>>, vector<8x8xf32>
    %2 = vector.shape_cast %1 : vector<8x8xf32> to vector<8x8x1xf32>
    %3 = vector.broadcast %2 : vector<8x8x1xf32> to vector<8x8x32xf32>
    %4 = arith.mulf %0, %3 : vector<8x8x32xf32>
    %cst = arith.constant dense<0.000000e+00> : vector<8x32xf32>
    %5 = vector.multi_reduction <add>, %4, %cst [1] : vector<8x8x32xf32> to vector<8x32xf32>
    %cst_4 = arith.constant dense<0.000000e+00> : vector<8xf32>
    %6 = vector.multi_reduction <add>, %1, %cst_4 [1] : vector<8x8xf32> to vector<8xf32>
    %7 = vector.shape_cast %6 : vector<8xf32> to vector<8x1xf32>
    %cst_5 = arith.constant 1.000000e+00 : f32
    %8 = vector.broadcast %cst_5 : f32 to vector<8x1xf32>
    %9 = arith.maximumf %7, %8 : vector<8x1xf32>
    %10 = vector.broadcast %9 : vector<8x1xf32> to vector<8x32xf32>
    %11 = arith.divf %5, %10 : vector<8x32xf32>
    %c0_6 = arith.constant 0 : index
    %c0_7 = arith.constant 0 : index
    %12 = vector.load %arg2[%c0_6, %c0_7] : memref<32x32xf32, #tpu.memory_space<vmem>>, vector<32x32xf32>
    %cst_8 = arith.constant dense<0.000000e+00> : vector<8x32xf32>
    %13 = tpu.matmul %11, %12, %cst_8 {dimension_numbers = #tpu.dot_dimension_numbers<[1], [0], [0], [1], [0, 0, 1, 1], [], []>} : vector<8x32xf32>, vector<32x32xf32>, vector<8x32xf32> -> vector<8x32xf32>
    %c0_9 = arith.constant 0 : index
    %c0_10 = arith.constant 0 : index
    %14 = vector.load %arg3[%c0_9, %c0_10] : memref<1x32xf32, #tpu.memory_space<vmem>>, vector<1x32xf32>
    %15 = vector.broadcast %14 : vector<1x32xf32> to vector<8x32xf32>
    %16 = arith.addf %13, %15 : vector<8x32xf32>
    %17 = math.tanh %16 : vector<8x32xf32>
    %c0_11 = arith.constant 0 : index
    %c0_12 = arith.constant 0 : index
    %18 = vector.load %arg4[%c0_11, %c0_12] : memref<32x64xf32, #tpu.memory_space<vmem>>, vector<32x64xf32>
    %cst_13 = arith.constant dense<0.000000e+00> : vector<8x64xf32>
    %19 = tpu.matmul %17, %18, %cst_13 {dimension_numbers = #tpu.dot_dimension_numbers<[1], [0], [0], [1], [0, 0, 1, 1], [], []>} : vector<8x32xf32>, vector<32x64xf32>, vector<8x64xf32> -> vector<8x64xf32>
    %c0_14 = arith.constant 0 : index
    %c0_15 = arith.constant 0 : index
    %20 = vector.load %arg5[%c0_14, %c0_15] : memref<1x64xf32, #tpu.memory_space<vmem>>, vector<1x64xf32>
    %21 = vector.broadcast %20 : vector<1x64xf32> to vector<8x64xf32>
    %22 = arith.addf %19, %21 : vector<8x64xf32>
    %23 = math.tanh %22 : vector<8x64xf32>
    %c0_16 = arith.constant 0 : index
    %c0_17 = arith.constant 0 : index
    %24 = vector.load %arg6[%c0_16, %c0_17] : memref<64x128xf32, #tpu.memory_space<vmem>>, vector<64x128xf32>
    %cst_18 = arith.constant dense<0.000000e+00> : vector<8x128xf32>
    %25 = tpu.matmul %23, %24, %cst_18 {dimension_numbers = #tpu.dot_dimension_numbers<[1], [0], [0], [1], [0, 0, 1, 1], [], []>} : vector<8x64xf32>, vector<64x128xf32>, vector<8x128xf32> -> vector<8x128xf32>
    %c0_19 = arith.constant 0 : index
    %c0_20 = arith.constant 0 : index
    %26 = vector.load %arg7[%c0_19, %c0_20] : memref<1x128xf32, #tpu.memory_space<vmem>>, vector<1x128xf32>
    %27 = vector.broadcast %26 : vector<1x128xf32> to vector<8x128xf32>
    %28 = arith.addf %25, %27 : vector<8x128xf32>
    %c0_21 = arith.constant 0 : index
    %c0_22 = arith.constant 0 : index
    %29 = vector.load %arg8[%c0_21, %c0_22] : memref<8x128xf32, #tpu.memory_space<vmem>>, vector<8x128xf32>
    tpu.vector_store %arg8[%c0_21, %c0_22], %28 {strides = array<i32>} : memref<8x128xf32, #tpu.memory_space<vmem>>, vector<8x128xf32>,
    return
  }
}

</mosaic_0001>

<llo_original>
// kernel: tpu_custom_call.1
$region0: #{tpu_custom_call.1}
  #allocation0 [shape = 'u32[]', space=smem, size = 0x4, offset = 0x4, fixed_abs, tag = 'smem constant byte address 0x4 - core index']
  #allocation1 [shape = 'u32[144,128]{1,0:T(1,128)}', space=vmem, size = 0x12000, scoped, tag = 'internal scratch']
  %s0 = inlined_call_operand.hbm [shape: f32[8,8,32], index: 0, kind: input, shape index: {}]
  %s1 = inlined_call_operand.hbm [shape: f32[8,8], index: 1, kind: input, shape index: {}]
  %s2 = inlined_call_operand.hbm [shape: f32[32,32], index: 2, kind: input, shape index: {}]
  %s3 = inlined_call_operand.vmem [shape: f32[1,32], index: 3, kind: input, shape index: {}]
  %s4 = inlined_call_operand.hbm [shape: f32[32,64], index: 4, kind: input, shape index: {}]
  %s5 = inlined_call_operand.vmem [shape: f32[1,64], index: 5, kind: input, shape index: {}]
  %s6 = inlined_call_operand.hbm [shape: f32[64,128], index: 6, kind: input, shape index: {}]
  %s7 = inlined_call_operand.vmem [shape: f32[1,128], index: 7, kind: input, shape index: {}]
  %s8 = inlined_call_operand.hbm [shape: f32[8,128], index: 8, kind: output, shape index: {}]
  %s9 = sld [smem:[#allocation0]]
  $region62: #{tpu_custom_call.1} parent=0
    _
  %s11 = ssub.s32 1, %s9
  %s12 = scalar_select 0, %s11, %s9
  $region1: #{tpu_custom_call.1} parent=0
    #allocation2 [shape = 'u8[32768]{0}', space=vmem, size = 0x8000, scoped, tag = 'input window, operand 0, single buffered']
    #allocation3 [shape = 's32[1]{0}', space=sflag, size = 0x4, scoped, tag = 'scoped memory for tpu_custom_call.1']
    #allocation4 [shape = 's32[1]{0}', space=sflag, size = 0x4, scoped, tag = 'scoped memory for tpu_custom_call.1']
    #allocation5 [shape = 'u8[4096]{0}', space=vmem, size = 0x1000, scoped, tag = 'input window, operand 1, single buffered']
    #allocation6 [shape = 's32[1]{0}', space=sflag, size = 0x4, scoped, tag = 'scoped memory for tpu_custom_call.1']
    #allocation7 [shape = 'u8[16384]{0}', space=vmem, size = 0x4000, scoped, tag = 'input window, operand 2, single buffered']
    #allocation8 [shape = 'u8[16384]{0}', space=vmem, size = 0x4000, scoped, tag = 'input window, operand 4, single buffered']
    #allocation9 [shape = 's32[1]{0}', space=sflag, size = 0x4, scoped, tag = 'scoped memory for tpu_custom_call.1']
    #allocation10 [shape = 'u8[32768]{0}', space=vmem, size = 0x8000, scoped, tag = 'input window, operand 6, single buffered']
    #allocation11 [shape = 'u8[4096]{0}', space=vmem, size = 0x1000, scoped, tag = 'output window, operand 0, single buffered']
    %13 = vsyncpa [#allocation3], 0
    %14 = vsyncpa [#allocation6], 0
    %15 = vsyncpa [#allocation9], 0
    %16 = vsyncpa [#allocation4], 0
    // Predicated region
    $region2: #{tpu_custom_call.1} parent=1 // pred_check
      _
    $region3: #{tpu_custom_call.1} parent=1 // pred_check_branch
      %18 = sbr.rel (0) target = $region5
    $region4: #{tpu_custom_call.1} parent=1 // pred_region
      %s20 = ssub.s32 1024, 1024
      %21 = vsyncadd [#allocation3], %s20
      %s22 = sshll.u32 [#allocation2], 4
      %s23 = int_to_ptr.vmem [resolvable:$true] %s22
      %28 = dma.hbm_to_vmem [thread:$0]  %s0, 1024, %s23, [#allocation3], 128, 128, 8
    $region5: #{tpu_custom_call.1} parent=1 // pred_fallthru
      _
    // Predicated region
    $region6: #{tpu_custom_call.1} parent=1 // pred_check
      _
    $region7: #{tpu_custom_call.1} parent=1 // pred_check_branch
      %30 = sbr.rel (0) target = $region9
    $region8: #{tpu_custom_call.1} parent=1 // pred_region
      %s32 = ssub.s32 128, 128
      %33 = vsyncadd [#allocation6], %s32
      %s35 = sshll.u32 [#allocation5], 4
      %s36 = int_to_ptr.vmem [resolvable:$true] %s35
      %38 = dma.hbm_to_vmem [thread:$0]  %s1, 128, %s36, [#allocation6]
    $region9: #{tpu_custom_call.1} parent=1 // pred_fallthru
      _
    // Predicated region
    $region10: #{tpu_custom_call.1} parent=1 // pred_check
      _
    $region11: #{tpu_custom_call.1} parent=1 // pred_check_branch
      %40 = sbr.rel (0) target = $region13
    $region12: #{tpu_custom_call.1} parent=1 // pred_region
      %s42 = ssub.s32 512, 512
      %43 = vsyncadd [#allocation6], %s42
      %s44 = sshll.u32 [#allocation7], 4
      %s45 = int_to_ptr.vmem [resolvable:$true] %s44
      %50 = dma.hbm_to_vmem [thread:$0]  %s2, 512, %s45, [#allocation6], 128, 128, 8
    $region13: #{tpu_custom_call.1} parent=1 // pred_fallthru
      _
    // Predicated region
    $region14: #{tpu_custom_call.1} parent=1 // pred_check
      _
    $region15: #{tpu_custom_call.1} parent=1 // pred_check_branch
      %52 = sbr.rel (0) target = $region17
    $region16: #{tpu_custom_call.1} parent=1 // pred_region
      _
    $region17: #{tpu_custom_call.1} parent=1 // pred_fallthru
      _
    // Predicated region
    $region18: #{tpu_custom_call.1} parent=1 // pred_check
      _
    $region19: #{tpu_custom_call.1} parent=1 // pred_check_branch
      %54 = sbr.rel (0) target = $region21
    $region20: #{tpu_custom_call.1} parent=1 // pred_region
      %s56 = ssub.s32 512, 512
      %57 = vsyncadd [#allocation9], %s56
      %s58 = sshll.u32 [#allocation8], 4
      %s59 = int_to_ptr.vmem [resolvable:$true] %s58
      %64 = dma.hbm_to_vmem [thread:$0]  %s4, 512, %s59, [#allocation9], 128, 128, 8
    $region21: #{tpu_custom_call.1} parent=1 // pred_fallthru
      _
    // Predicated region
    $region22: #{tpu_custom_call.1} parent=1 // pred_check
      _
    $region23: #{tpu_custom_call.1} parent=1 // pred_check_branch
      %66 = sbr.rel (0) target = $region25
    $region24: #{tpu_custom_call.1} parent=1 // pred_region
      _
    $region25: #{tpu_custom_call.1} parent=1 // pred_fallthru
      _
    // Predicated region
    $region26: #{tpu_custom_call.1} parent=1 // pred_check
      _
    $region27: #{tpu_custom_call.1} parent=1 // pred_check_branch
      %68 = sbr.rel (0) target = $region29
    $region28: #{tpu_custom_call.1} parent=1 // pred_region
      %s70 = ssub.s32 1024, 1024
      %71 = vsyncadd [#allocation9], %s70
      %s72 = sshll.u32 [#allocation10], 4
      %s73 = int_to_ptr.vmem [resolvable:$true] %s72
      %78 = dma.hbm_to_vmem [thread:$0]  %s6, 1024, %s73, [#allocation9], 128, 128, 8
    $region29: #{tpu_custom_call.1} parent=1 // pred_fallthru
      _
    // Predicated region
    $region30: #{tpu_custom_call.1} parent=1 // pred_check
      _
    $region31: #{tpu_custom_call.1} parent=1 // pred_check_branch
      %80 = sbr.rel (0) target = $region33
    $region32: #{tpu_custom_call.1} parent=1 // pred_region
      _
    $region33: #{tpu_custom_call.1} parent=1 // pred_fallthru
      _
    // Predicated region
    $region34: #{tpu_custom_call.1} parent=1 // pred_check
      _
    $region35: #{tpu_custom_call.1} parent=1 // pred_check_branch
      %82 = sbr.rel (0) target = $region37
    $region36: #{tpu_custom_call.1} parent=1 // pred_region
      %83 = dma.done [#allocation3], 1024
    $region37: #{tpu_custom_call.1} parent=1 // pred_fallthru
      _
    // Predicated region
    $region38: #{tpu_custom_call.1} parent=1 // pred_check
      _
    $region39: #{tpu_custom_call.1} parent=1 // pred_check_branch
      %85 = sbr.rel (0) target = $region41
    $region40: #{tpu_custom_call.1} parent=1 // pred_region
      %86 = dma.done [#allocation6], 128
    $region41: #{tpu_custom_call.1} parent=1 // pred_fallthru
      _
    // Predicated region
    $region42: #{tpu_custom_call.1} parent=1 // pred_check
      _
    $region43: #{tpu_custom_call.1} parent=1 // pred_check_branch
      %88 = sbr.rel (0) target = $region45
    $region44: #{tpu_custom_call.1} parent=1 // pred_region
      %89 = dma.done [#allocation6], 512
    $region45: #{tpu_custom_call.1} parent=1 // pred_fallthru
      _
    // Predicated region
    $region46: #{tpu_custom_call.1} parent=1 // pred_check
      _
    $region47: #{tpu_custom_call.1} parent=1 // pred_check_branch
      %91 = sbr.rel (0) target = $region49
    $region48: #{tpu_custom_call.1} parent=1 // pred_region
      %92 = dma.done [#allocation9], 512
    $region49: #{tpu_custom_call.1} parent=1 // pred_fallthru
      _
    // Predicated region
    $region50: #{tpu_custom_call.1} parent=1 // pred_check
      _
    $region51: #{tpu_custom_call.1} parent=1 // pred_check_branch
      %94 = sbr.rel (0) target = $region53
    $region52: #{tpu_custom_call.1} parent=1 // pred_region
      %95 = dma.done [#allocation9], 1024
    $region53: #{tpu_custom_call.1} parent=1 // pred_fallthru
      _
    %v96 = vld [vmem:[#allocation2] sm:$0xff]
    %v97 = vld [vmem:[#allocation2 + $0x8] sm:$0xff]
    %v98 = vld [vmem:[#allocation2 + $0x10] sm:$0xff]
    %v99 = vld [vmem:[#allocation2 + $0x18] sm:$0xff]
    %v100 = vld [vmem:[#allocation2 + $0x20] sm:$0xff]
    %v101 = vld [vmem:[#allocation2 + $0x28] sm:$0xff]
    %v102 = vld [vmem:[#allocation2 + $0x30] sm:$0xff]
    %v103 = vld [vmem:[#allocation2 + $0x38] sm:$0xff]
    %v104 = vld [vmem:[#allocation5] sm:$0xff]
    %v105 = vlaneseq
    %v106 = vshrl.u32 %v105, 7
    %v107 = vsub.s32 0, %v106
    %v108 = vrot.slane %v104, %v107
    %110 = vbcast.lane.b32.xlu0 %v108, 256
    %v111 = vpop.permute.xlu0 %110
    %v112 = vlaneseq
    %v113 = vshrl.u32 %v112, 7
    %v114 = vsub.s32 1, %v113
    %v115 = vrot.slane %v104, %v114
    %117 = vbcast.lane.b32.xlu0 %v115, 256
    %v118 = vpop.permute.xlu0 %117
    %v119 = vlaneseq
    %v120 = vshrl.u32 %v119, 7
    %v121 = vsub.s32 2, %v120
    %v122 = vrot.slane %v104, %v121
    %124 = vbcast.lane.b32.xlu0 %v122, 256
    %v125 = vpop.permute.xlu0 %124
    %v126 = vlaneseq
    %v127 = vshrl.u32 %v126, 7
    %v128 = vsub.s32 3, %v127
    %v129 = vrot.slane %v104, %v128
    %131 = vbcast.lane.b32.xlu0 %v129, 256
    %v132 = vpop.permute.xlu0 %131
    %v133 = vlaneseq
    %v134 = vshrl.u32 %v133, 7
    %v135 = vsub.s32 4, %v134
    %v136 = vrot.slane %v104, %v135
    %138 = vbcast.lane.b32.xlu0 %v136, 256
    %v139 = vpop.permute.xlu0 %138
    %v140 = vlaneseq
    %v141 = vshrl.u32 %v140, 7
    %v142 = vsub.s32 5, %v141
    %v143 = vrot.slane %v104, %v142
    %145 = vbcast.lane.b32.xlu0 %v143, 256
    %v146 = vpop.permute.xlu0 %145
    %v147 = vlaneseq
    %v148 = vshrl.u32 %v147, 7
    %v149 = vsub.s32 6, %v148
    %v150 = vrot.slane %v104, %v149
    %152 = vbcast.lane.b32.xlu0 %v150, 256
    %v153 = vpop.permute.xlu0 %152
    %v154 = vlaneseq
    %v155 = vshrl.u32 %v154, 7
    %v156 = vsub.s32 7, %v155
    %v157 = vrot.slane %v104, %v156
    %159 = vbcast.lane.b32.xlu0 %v157, 256
    %v160 = vpop.permute.xlu0 %159
    %v161 = vmul.f32 %v96, %v111
    %v162 = vmul.f32 %v97, %v118
    %v163 = vmul.f32 %v98, %v125
    %v164 = vmul.f32 %v99, %v132
    %v165 = vmul.f32 %v100, %v139
    %v166 = vmul.f32 %v101, %v146
    %v167 = vmul.f32 %v102, %v153
    %v168 = vmul.f32 %v103, %v160
    %vm169 = vcmask 261120
    %v170 = vsel %vm169, %v161, 0.0
    %v171 = vrot.slane %v170, 4
    %v172 = vadd.f32 %v170, %v171
    %v173 = vrot.slane %v172, 2
    %v174 = vadd.f32 %v172, %v173
    %v175 = vrot.slane %v174, 1
    %v176 = vadd.f32 %v174, %v175
    %v177 = vsel %vm169, %v162, 0.0
    %v178 = vrot.slane %v177, 4
    %v179 = vadd.f32 %v177, %v178
    %v180 = vrot.slane %v179, 2
    %v181 = vadd.f32 %v179, %v180
    %v182 = vrot.slane %v181, 1
    %v183 = vadd.f32 %v181, %v182
    %v184 = vsel %vm169, %v163, 0.0
    %v185 = vrot.slane %v184, 4
    %v186 = vadd.f32 %v184, %v185
    %v187 = vrot.slane %v186, 2
    %v188 = vadd.f32 %v186, %v187
    %v189 = vrot.slane %v188, 1
    %v190 = vadd.f32 %v188, %v189
    %v191 = vsel %vm169, %v164, 0.0
    %v192 = vrot.slane %v191, 4
    %v193 = vadd.f32 %v191, %v192
    %v194 = vrot.slane %v193, 2
    %v195 = vadd.f32 %v193, %v194
    %v196 = vrot.slane %v195, 1
    %v197 = vadd.f32 %v195, %v196
    %v198 = vsel %vm169, %v165, 0.0
    %v199 = vrot.slane %v198, 4
    %v200 = vadd.f32 %v198, %v199
    %v201 = vrot.slane %v200, 2
    %v202 = vadd.f32 %v200, %v201
    %v203 = vrot.slane %v202, 1
    %v204 = vadd.f32 %v202, %v203
    %v205 = vsel %vm169, %v166, 0.0
    %v206 = vrot.slane %v205, 4
    %v207 = vadd.f32 %v205, %v206
    %v208 = vrot.slane %v207, 2
    %v209 = vadd.f32 %v207, %v208
    %v210 = vrot.slane %v209, 1
    %v211 = vadd.f32 %v209, %v210
    %v212 = vsel %vm169, %v167, 0.0
    %v213 = vrot.slane %v212, 4
    %v214 = vadd.f32 %v212, %v213
    %v215 = vrot.slane %v214, 2
    %v216 = vadd.f32 %v214, %v215
    %v217 = vrot.slane %v216, 1
    %v218 = vadd.f32 %v216, %v217
    %v219 = vsel %vm169, %v168, 0.0
    %v220 = vrot.slane %v219, 4
    %v221 = vadd.f32 %v219, %v220
    %v222 = vrot.slane %v221, 2
    %v223 = vadd.f32 %v221, %v222
    %v224 = vrot.slane %v223, 1
    %v225 = vadd.f32 %v223, %v224
    %vm226 = vcmask 64512
    %v227 = vsel %vm226, %v104, 0.0
    %228 = vadd.xlane.f32.xlu0 %v227
    %v229 = vpop.xlane.xlu0 %228
    %v230 = vmax.f32 %v229, 1.0
    %v232 = vrot.slane %v230, 1
    %v233 = vrot.slane %v230, 2
    %v234 = vrot.slane %v230, 3
    %v235 = vrot.slane %v230, 4
    %v236 = vrot.slane %v230, 5
    %v237 = vrot.slane %v230, 6
    %v238 = vrot.slane %v230, 7
    %v247 = vrcp.pop %v230
    %v248 = vmul.f32 %v176, %v247
    %v249 = vrcp.pop %v232
    %v250 = vmul.f32 %v183, %v249
    %v251 = vrcp.pop %v233
    %v252 = vmul.f32 %v190, %v251
    %v253 = vrcp.pop %v234
    %v254 = vmul.f32 %v197, %v253
    %v255 = vrcp.pop %v235
    %v256 = vmul.f32 %v204, %v255
    %v257 = vrcp.pop %v236
    %v258 = vmul.f32 %v211, %v257
    %v259 = vrcp.pop %v237
    %v260 = vmul.f32 %v218, %v259
    %v261 = vrcp.pop %v238
    %v262 = vmul.f32 %v225, %v261
    %v263 = vld [vmem:[#allocation7] sm:$0xff]
    %v264 = vld [vmem:[#allocation7 + $0x8] sm:$0xff]
    %v265 = vld [vmem:[#allocation7 + $0x10] sm:$0xff]
    %v266 = vld [vmem:[#allocation7 + $0x18] sm:$0xff]
    %v267 = vld [vmem:[%s3] sm:$0x1]
    %v269 = vlaneseq
    %v270 = vshrl.u32 %v269, 7
    %v271 = vsub.s32 0, %v270
    %v272 = vrot.slane %v267, %v271
    %v282 = vrot.slane %v250, 7
    %vm283 = vcmask 1041409
    %v284 = vsel %vm283, %v282, %v248
    %v285 = vrot.slane %v252, 6
    %vm286 = vcmask 1042434
    %v287 = vsel %vm286, %v285, %v284
    %v288 = vrot.slane %v254, 5
    %vm289 = vcmask 1043459
    %v290 = vsel %vm289, %v288, %v287
    %v291 = vrot.slane %v256, 4
    %vm292 = vcmask 1044484
    %v293 = vsel %vm292, %v291, %v290
    %v294 = vrot.slane %v258, 3
    %vm295 = vcmask 1045509
    %v296 = vsel %vm295, %v294, %v293
    %v297 = vrot.slane %v260, 2
    %vm298 = vcmask 1046534
    %v299 = vsel %vm298, %v297, %v296
    %v300 = vrot.slane %v262, 1
    %vm301 = vcmask 1047559
    %v302 = vsel %vm301, %v300, %v299
    %v303 = vsel %vm169, %v302, 0
    %305 = vmatprep.subr.mxu0 0.0
    %306 = vmatpush1.msra.mxu0 0.0
    %307 = vmatprep.subr.mxu0 0.0
    %308 = vmatpush1.msra.mxu0 0.0
    %309 = vmatprep.subr.mxu0 0.0
    %310 = vmatpush1.msra.mxu0 0.0
    %311 = vmatprep.subr.mxu0 0.0
    %312 = vmatpush1.msra.mxu0 0.0
    %313 = vmatprep.subr.mxu0 0.0
    %314 = vmatpush1.msra.mxu0 0.0
    %315 = vmatprep.subr.mxu0 0.0
    %316 = vmatpush1.msra.mxu0 0.0
    %317 = vmatprep.subr.mxu0 0.0
    %318 = vmatpush1.msra.mxu0 0.0
    %319 = vmatprep.subr.mxu0 0.0
    %320 = vmatpush1.msra.mxu0 0.0
    %321 = vmatprep.subr.mxu0 0.0
    %322 = vmatpush1.msra.mxu0 0.0
    %323 = vmatprep.subr.mxu0 0.0
    %324 = vmatpush1.msra.mxu0 0.0
    %325 = vmatprep.subr.mxu0 0.0
    %326 = vmatpush1.msra.mxu0 0.0
    %327 = vmatprep.subr.mxu0 0.0
    %328 = vmatpush1.msra.mxu0 0.0
    %329 = vmatprep.subr.mxu0 0.0
    %330 = vmatpush1.msra.mxu0 %v266
    %331 = vmatprep.subr.mxu0 0.0
    %332 = vmatpush1.msra.mxu0 %v265
    %333 = vmatprep.subr.mxu0 0.0
    %334 = vmatpush1.msra.mxu0 %v264
    %335 = vmatprep.subr.mxu0 0.0
    %336 = vmatpush1.msra.mxu0 %v263
    %337 = vmatprep.subr.mxu0 0.0
    %338 = vmatpush2.msra.mxu0 0.0
    %339 = vmatprep.subr.mxu0 0.0
    %340 = vmatpush2.msra.mxu0 0.0
    %341 = vmatprep.subr.mxu0 0.0
    %342 = vmatpush2.msra.mxu0 0.0
    %343 = vmatprep.subr.mxu0 0.0
    %344 = vmatpush2.msra.mxu0 0.0
    %345 = vmatprep.subr.mxu0 0.0
    %346 = vmatpush2.msra.mxu0 0.0
    %347 = vmatprep.subr.mxu0 0.0
    %348 = vmatpush2.msra.mxu0 0.0
    %349 = vmatprep.subr.mxu0 0.0
    %350 = vmatpush2.msra.mxu0 0.0
    %351 = vmatprep.subr.mxu0 0.0
    %352 = vmatpush2.msra.mxu0 0.0
    %353 = vmatprep.subr.mxu0 0.0
    %354 = vmatpush2.msra.mxu0 0.0
    %355 = vmatprep.subr.mxu0 0.0
    %356 = vmatpush2.msra.mxu0 0.0
    %357 = vmatprep.subr.mxu0 0.0
    %358 = vmatpush2.msra.mxu0 0.0
    %359 = vmatprep.subr.mxu0 0.0
    %360 = vmatpush2.msra.mxu0 0.0
    %361 = vmatprep.subr.mxu0 0.0
    %362 = vmatpush2.msra.mxu0 0.0
    %363 = vmatprep.subr.mxu0 0.0
    %364 = vmatpush2.msra.mxu0 0.0
    %365 = vmatprep.subr.mxu0 0.0
    %366 = vmatpush2.msra.mxu0 0.0
    %367 = vmatprep.subr.mxu0 0.0
    %368 = vmatpush2.msra.mxu0 0.0
    %369 = vmatprep.mubr.f32.mxu0 0.0
    %370 = vmatmul.mubr.f32.gmra.mxu0 %v303
    %v371 = vpop.f32.mrf.mxu0
    %v372 = vadd.f32 %v272, %v371
    %v373 = vpop.f32.mrf.mxu0
    %374 = vdwg.mxu0
    %v375 = vtanh.pop %v372
    %v376 = vld [vmem:[#allocation8] sm:$0xff]
    %v377 = vld [vmem:[#allocation8 + $0x8] sm:$0xff]
    %v378 = vld [vmem:[#allocation8 + $0x10] sm:$0xff]
    %v379 = vld [vmem:[#allocation8 + $0x18] sm:$0xff]
    %v380 = vld [vmem:[%s5] sm:$0x1]
    %v382 = vlaneseq
    %v383 = vshrl.u32 %v382, 7
    %v384 = vsub.s32 0, %v383
    %v385 = vrot.slane %v380, %v384
    %v388 = vsel %vm169, %v375, 0
    %390 = vmatprep.subr.mxu0 0.0
    %391 = vmatpush1.msra.mxu0 0.0
    %392 = vmatprep.subr.mxu0 0.0
    %393 = vmatpush1.msra.mxu0 0.0
    %394 = vmatprep.subr.mxu0 0.0
    %395 = vmatpush1.msra.mxu0 0.0
    %396 = vmatprep.subr.mxu0 0.0
    %397 = vmatpush1.msra.mxu0 0.0
    %398 = vmatprep.subr.mxu0 0.0
    %399 = vmatpush1.msra.mxu0 0.0
    %400 = vmatprep.subr.mxu0 0.0
    %401 = vmatpush1.msra.mxu0 0.0
    %402 = vmatprep.subr.mxu0 0.0
    %403 = vmatpush1.msra.mxu0 0.0
    %404 = vmatprep.subr.mxu0 0.0
    %405 = vmatpush1.msra.mxu0 0.0
    %406 = vmatprep.subr.mxu0 0.0
    %407 = vmatpush1.msra.mxu0 0.0
    %408 = vmatprep.subr.mxu0 0.0
    %409 = vmatpush1.msra.mxu0 0.0
    %410 = vmatprep.subr.mxu0 0.0
    %411 = vmatpush1.msra.mxu0 0.0
    %412 = vmatprep.subr.mxu0 0.0
    %413 = vmatpush1.msra.mxu0 0.0
    %414 = vmatprep.subr.mxu0 0.0
    %415 = vmatpush1.msra.mxu0 %v379
    %416 = vmatprep.subr.mxu0 0.0
    %417 = vmatpush1.msra.mxu0 %v378
    %418 = vmatprep.subr.mxu0 0.0
    %419 = vmatpush1.msra.mxu0 %v377
    %420 = vmatprep.subr.mxu0 0.0
    %421 = vmatpush1.msra.mxu0 %v376
    %422 = vmatprep.subr.mxu0 0.0
    %423 = vmatpush2.msra.mxu0 0.0
    %424 = vmatprep.subr.mxu0 0.0
    %425 = vmatpush2.msra.mxu0 0.0
    %426 = vmatprep.subr.mxu0 0.0
    %427 = vmatpush2.msra.mxu0 0.0
    %428 = vmatprep.subr.mxu0 0.0
    %429 = vmatpush2.msra.mxu0 0.0
    %430 = vmatprep.subr.mxu0 0.0
    %431 = vmatpush2.msra.mxu0 0.0
    %432 = vmatprep.subr.mxu0 0.0
    %433 = vmatpush2.msra.mxu0 0.0
    %434 = vmatprep.subr.mxu0 0.0
    %435 = vmatpush2.msra.mxu0 0.0
    %436 = vmatprep.subr.mxu0 0.0
    %437 = vmatpush2.msra.mxu0 0.0
    %438 = vmatprep.subr.mxu0 0.0
    %439 = vmatpush2.msra.mxu0 0.0
    %440 = vmatprep.subr.mxu0 0.0
    %441 = vmatpush2.msra.mxu0 0.0
    %442 = vmatprep.subr.mxu0 0.0
    %443 = vmatpush2.msra.mxu0 0.0
    %444 = vmatprep.subr.mxu0 0.0
    %445 = vmatpush2.msra.mxu0 0.0
    %446 = vmatprep.subr.mxu0 0.0
    %447 = vmatpush2.msra.mxu0 0.0
    %448 = vmatprep.subr.mxu0 0.0
    %449 = vmatpush2.msra.mxu0 0.0
    %450 = vmatprep.subr.mxu0 0.0
    %451 = vmatpush2.msra.mxu0 0.0
    %452 = vmatprep.subr.mxu0 0.0
    %453 = vmatpush2.msra.mxu0 0.0
    %454 = vmatprep.mubr.f32.mxu0 0.0
    %455 = vmatmul.mubr.f32.gmra.mxu0 %v388
    %v456 = vpop.f32.mrf.mxu0
    %v457 = vadd.f32 %v385, %v456
    %v458 = vpop.f32.mrf.mxu0
    %459 = vdwg.mxu0
    %v460 = vtanh.pop %v457
    %v461 = vld [vmem:[#allocation10] sm:$0xff]
    %v462 = vld [vmem:[#allocation10 + $0x8] sm:$0xff]
    %v463 = vld [vmem:[#allocation10 + $0x10] sm:$0xff]
    %v464 = vld [vmem:[#allocation10 + $0x18] sm:$0xff]
    %v465 = vld [vmem:[#allocation10 + $0x20] sm:$0xff]
    %v466 = vld [vmem:[#allocation10 + $0x28] sm:$0xff]
    %v467 = vld [vmem:[#allocation10 + $0x30] sm:$0xff]
    %v468 = vld [vmem:[#allocation10 + $0x38] sm:$0xff]
    %v469 = vld [vmem:[%s7] sm:$0x1]
    %v471 = vlaneseq
    %v472 = vshrl.u32 %v471, 7
    %v473 = vsub.s32 0, %v472
    %v474 = vrot.slane %v469, %v473
    %vm476 = vcmask 523264
    %v478 = vsel %vm476, %v460, 0
    %480 = vmatprep.subr.mxu0 0.0
    %481 = vmatpush1.msra.mxu0 0.0
    %482 = vmatprep.subr.mxu0 0.0
    %483 = vmatpush1.msra.mxu0 0.0
    %484 = vmatprep.subr.mxu0 0.0
    %485 = vmatpush1.msra.mxu0 0.0
    %486 = vmatprep.subr.mxu0 0.0
    %487 = vmatpush1.msra.mxu0 0.0
    %488 = vmatprep.subr.mxu0 0.0
    %489 = vmatpush1.msra.mxu0 0.0
    %490 = vmatprep.subr.mxu0 0.0
    %491 = vmatpush1.msra.mxu0 0.0
    %492 = vmatprep.subr.mxu0 0.0
    %493 = vmatpush1.msra.mxu0 0.0
    %494 = vmatprep.subr.mxu0 0.0
    %495 = vmatpush1.msra.mxu0 0.0
    %496 = vmatprep.subr.mxu0 0.0
    %497 = vmatpush1.msra.mxu0 %v468
    %498 = vmatprep.subr.mxu0 0.0
    %499 = vmatpush1.msra.mxu0 %v467
    %500 = vmatprep.subr.mxu0 0.0
    %501 = vmatpush1.msra.mxu0 %v466
    %502 = vmatprep.subr.mxu0 0.0
    %503 = vmatpush1.msra.mxu0 %v465
    %504 = vmatprep.subr.mxu0 0.0
    %505 = vmatpush1.msra.mxu0 %v464
    %506 = vmatprep.subr.mxu0 0.0
    %507 = vmatpush1.msra.mxu0 %v463
    %508 = vmatprep.subr.mxu0 0.0
    %509 = vmatpush1.msra.mxu0 %v462
    %510 = vmatprep.subr.mxu0 0.0
    %511 = vmatpush1.msra.mxu0 %v461
    %512 = vmatprep.subr.mxu0 0.0
    %513 = vmatpush2.msra.mxu0 0.0
    %514 = vmatprep.subr.mxu0 0.0
    %515 = vmatpush2.msra.mxu0 0.0
    %516 = vmatprep.subr.mxu0 0.0
    %517 = vmatpush2.msra.mxu0 0.0
    %518 = vmatprep.subr.mxu0 0.0
    %519 = vmatpush2.msra.mxu0 0.0
    %520 = vmatprep.subr.mxu0 0.0
    %521 = vmatpush2.msra.mxu0 0.0
    %522 = vmatprep.subr.mxu0 0.0
    %523 = vmatpush2.msra.mxu0 0.0
    %524 = vmatprep.subr.mxu0 0.0
    %525 = vmatpush2.msra.mxu0 0.0
    %526 = vmatprep.subr.mxu0 0.0
    %527 = vmatpush2.msra.mxu0 0.0
    %528 = vmatprep.subr.mxu0 0.0
    %529 = vmatpush2.msra.mxu0 0.0
    %530 = vmatprep.subr.mxu0 0.0
    %531 = vmatpush2.msra.mxu0 0.0
    %532 = vmatprep.subr.mxu0 0.0
    %533 = vmatpush2.msra.mxu0 0.0
    %534 = vmatprep.subr.mxu0 0.0
    %535 = vmatpush2.msra.mxu0 0.0
    %536 = vmatprep.subr.mxu0 0.0
    %537 = vmatpush2.msra.mxu0 0.0
    %538 = vmatprep.subr.mxu0 0.0
    %539 = vmatpush2.msra.mxu0 0.0
    %540 = vmatprep.subr.mxu0 0.0
    %541 = vmatpush2.msra.mxu0 0.0
    %542 = vmatprep.subr.mxu0 0.0
    %543 = vmatpush2.msra.mxu0 0.0
    %544 = vmatprep.mubr.f32.mxu0 0.0
    %545 = vmatmul.mubr.f32.gmra.mxu0 %v478
    %v546 = vpop.f32.mrf.mxu0
    %v547 = vadd.f32 %v474, %v546
    %v548 = vpop.f32.mrf.mxu0
    %549 = vdwg.mxu0
    %550 = vst [vmem:[#allocation11] sm:$0xff] %v547
    // Predicated region
    $region54: #{tpu_custom_call.1} parent=1 // pred_check
      _
    $region55: #{tpu_custom_call.1} parent=1 // pred_check_branch
      %552 = sbr.rel (0) target = $region57
    $region56: #{tpu_custom_call.1} parent=1 // pred_region
      %s554 = ssub.s32 128, 128
      %555 = vsyncadd [#allocation4], %s554
      %s557 = sshll.u32 [#allocation11], 4
      %s558 = int_to_ptr.vmem [resolvable:$true] %s557
      %560 = dma.vmem_to_hbm [thread:$0]  %s558, 128, %s8, [#allocation4]
    $region57: #{tpu_custom_call.1} parent=1 // pred_fallthru
      _
    // Predicated region
    $region58: #{tpu_custom_call.1} parent=1 // pred_check
      _
    $region59: #{tpu_custom_call.1} parent=1 // pred_check_branch
      %562 = sbr.rel (0) target = $region61
    $region60: #{tpu_custom_call.1} parent=1 // pred_region
      %563 = dma.done [#allocation4], 128
    $region61: #{tpu_custom_call.1} parent=1 // pred_fallthru
      _
    %564 = vsyncpa [#allocation3], 1
    %565 = vsyncpa [#allocation6], 1
    %566 = vsyncpa [#allocation9], 1
    %567 = vsyncpa [#allocation4], 1

</llo_original>
